<compile_context>
chip_gen: v7x
topology: tpu7x:2x2x1
jax: 0.10.0
libtpu: 0.0.40
codegen_flags: <defaults>
</compile_context>

<pallas_src>
import numpy as np
import jax
import jax.numpy as jnp
from jax import lax
from jax.experimental import pallas as pl
from jax.experimental.pallas import tpu as pltpu

HIDDEN = 10
INPUT_SIZE = 1          # per the module: nn.LSTM(input_size=1, ...)
GATE_PAD = 32           # per-gate lane padding; 4 gates fit one 128-lane block
LANES = 4 * GATE_PAD    # 128


def recognizer_kernel(x_ref, wih_ref, whh_ref, b_ref, wout_ref, bout_ref,
                      out_ref, xwb_ref, hseq_ref):
    # x_ref:    (T, 1)        selected batch row of the input sequence
    # wih_ref:  (1, 128)      packed W_ih (gate g occupies lanes [g*32, g*32+H))
    # whh_ref:  (32, 128)     packed, pre-transposed W_hh (rows >= H are zero)
    # b_ref:    (1, 128)      packed b_ih + b_hh
    # wout_ref: (1, 32)       lane-dense Linear(10 -> 1) weight row (lanes >= H zero)
    # bout_ref: (1, 1)        Linear bias
    # out_ref:  (T, 1)        sigmoid(Linear(h_t)) for every timestep
    # xwb_ref:  (T, 128) VMEM scratch: per-step input+bias gate contribution
    # hseq_ref: (T, 32)  VMEM scratch: per-timestep hidden rows
    T = x_ref.shape[0]
    GP = GATE_PAD
    L = 4 * GP

    # Prologue (off the serial chain): input + bias contribution for all steps.
    xwb_ref[...] = x_ref[...] * wih_ref[...] + b_ref[...]            # (T, 128)

    # Constant lane masks for the fused gate nonlinearity:
    #   sigmoid(z) = 0.5*tanh(0.5*z) + 0.5 on i/f/o lanes, plain tanh on g lanes.
    lane = lax.broadcasted_iota(jnp.int32, (1, L), 1)
    is_g = jnp.logical_and(lane >= 2 * GP, lane < 3 * GP)
    scale = jnp.where(is_g, jnp.float32(1.0), jnp.float32(0.5))      # pre & post scale
    shift = jnp.where(is_g, jnp.float32(0.0), jnp.float32(0.5))      # post add

    h = jnp.zeros((1, GP), jnp.float32)
    c = jnp.zeros((1, GP), jnp.float32)

    for t in range(T):                       # static unroll; T is tiny
        # RHS is the ref at the use site (no hoisted multi-vreg value), so the
        # (32,128) weight can stay staged across steps.
        gates = xwb_ref[t:t + 1, :] + jnp.dot(
            h, whh_ref[...], preferred_element_type=jnp.float32)     # (1, 128)
        # one EUP tanh covers all four gates
        act = jnp.tanh(gates * scale) * scale + shift                # (1, 128)
        i_a = act[:, 0 * GP:1 * GP]          # lane extractions (XLU slot)
        f_a = act[:, 1 * GP:2 * GP]
        g_a = act[:, 2 * GP:3 * GP]
        o_a = act[:, 3 * GP:4 * GP]
        c = f_a * c + i_a * g_a
        h = o_a * jnp.tanh(c)
        hseq_ref[t:t + 1, :] = h             # store off the dependent chain

    # Epilogue: Linear(10 -> 1) + Sigmoid as VPU multiply + lane reduction
    # (no 1/128-utilization MXU push).  Pad lanes of hseq and wout are zero.
    y = (jnp.sum(hseq_ref[...] * wout_ref[...], axis=-1, keepdims=True)
         + bout_ref[...])                                            # (T, 1)
    out_ref[...] = jax.nn.sigmoid(y)


def pack_params(w_ih, w_hh, b_ih, b_hh, w_out, b_out):
    """One-time, host-side (numpy) parameter packing — NOT in the per-call path."""
    H, GP = HIDDEN, GATE_PAD
    w_ih = np.asarray(w_ih, np.float32)             # (4H, 1)
    w_hh = np.asarray(w_hh, np.float32)             # (4H, H)
    b = np.asarray(b_ih, np.float32) + np.asarray(b_hh, np.float32)   # (4H,)
    w_out = np.asarray(w_out, np.float32)           # (1, H)
    b_out = np.asarray(b_out, np.float32)           # (1,)

    wih_row = np.zeros((1, 4 * GP), np.float32)
    whh_pack = np.zeros((GP, 4 * GP), np.float32)
    b_row = np.zeros((1, 4 * GP), np.float32)
    for g in range(4):                              # PyTorch gate order: i, f, g, o
        wih_row[0, g * GP:g * GP + H] = w_ih[g * H:(g + 1) * H, 0]
        whh_pack[0:H, g * GP:g * GP + H] = w_hh[g * H:(g + 1) * H, :].T
        b_row[0, g * GP:g * GP + H] = b[g * H:(g + 1) * H]

    wout_row = np.zeros((1, GP), np.float32)
    wout_row[0, 0:H] = w_out[0, :]
    bout = b_out.reshape(1, 1)
    return (jnp.asarray(wih_row), jnp.asarray(whh_pack), jnp.asarray(b_row),
            jnp.asarray(wout_row), jnp.asarray(bout))


def recognizer_forward(x, wih_row, whh_pack, b_row, wout_row, bout):
    T, B, _ = x.shape
    # Only the last batch row's sequence reaches the output (r_out[:, -1, :]
    # with batch_first=False) — free wrapper-side slice.
    x_last = x[:, B - 1, :].astype(jnp.float32)     # (T, 1)

    vmem = pl.BlockSpec(memory_space=pltpu.MemorySpace.VMEM)
    return pl.pallas_call(
        recognizer_kernel,
        out_shape=jax.ShapeDtypeStruct((T, 1), jnp.float32),
        in_specs=[vmem] * 6,
        out_specs=vmem,
        scratch_shapes=[pltpu.VMEM((T, LANES), jnp.float32),     # xwb
                        pltpu.VMEM((T, GATE_PAD), jnp.float32)], # hseq
    )(x_last, wih_row, whh_pack, b_row, wout_row, bout)


def reference_forward(x, w_ih, w_hh, b_ih, b_hh, w_out, b_out):
    # pure-JAX reference matching torch.nn.LSTM semantics (h0 = c0 = 0)
    T, B, _ = x.shape
    H = HIDDEN
    h = jnp.zeros((B, H), jnp.float32)
    c = jnp.zeros((B, H), jnp.float32)
    outs = []
    for t in range(T):
        gates = x[t] @ w_ih.T + h @ w_hh.T + b_ih + b_hh
        i_g = jax.nn.sigmoid(gates[:, 0:H])
        f_g = jax.nn.sigmoid(gates[:, H:2 * H])
        g_g = jnp.tanh(gates[:, 2 * H:3 * H])
        o_g = jax.nn.sigmoid(gates[:, 3 * H:4 * H])
        c = f_g * c + i_g * g_g
        h = o_g * jnp.tanh(c)
        outs.append(h)
    r_out = jnp.stack(outs, axis=0)          # (T, B, H)
    sel = r_out[:, -1, :]                    # (T, H)  -- last BATCH element!
    return jax.nn.sigmoid(sel @ w_out.T + b_out)


if __name__ == "__main__":
    T, B = 8, 4          # seq_len=8, batch=4, input_size=1 (time-major)
    H = HIDDEN

    key = jax.random.PRNGKey(0)
    kx, k1, k2, k3, k4, k5, k6 = jax.random.split(key, 7)

    # deterministic PyTorch-style init: U(-1/sqrt(H), 1/sqrt(H))
    bound = 1.0 / jnp.sqrt(jnp.float32(H))
    w_ih = jax.random.uniform(k1, (4 * H, INPUT_SIZE), jnp.float32, -bound, bound)
    w_hh = jax.random.uniform(k2, (4 * H, H), jnp.float32, -bound, bound)
    b_ih = jax.random.uniform(k3, (4 * H,), jnp.float32, -bound, bound)
    b_hh = jax.random.uniform(k4, (4 * H,), jnp.float32, -bound, bound)
    w_out = jax.random.uniform(k5, (1, H), jnp.float32, -bound, bound)
    b_out = jax.random.uniform(k6, (1,), jnp.float32, -bound, bound)

    x = jax.random.normal(kx, (T, B, INPUT_SIZE), jnp.float32)

    # One-time parameter packing (init-time, not per forward call).
    packed = pack_params(w_ih, w_hh, b_ih, b_hh, w_out, b_out)

    out = recognizer_forward(x, *packed)
    out = jax.block_until_ready(out)

    ref = reference_forward(x, w_ih, w_hh, b_ih, b_hh, w_out, b_out)
    assert out.shape == (T, 1)
    assert jnp.allclose(out, ref, atol=1e-5, rtol=1e-5)

    print("KERNEL_OK")
</pallas_src>

<mosaic_0001>
module attributes {stable_mosaic.version = 11 : i64} {
  func.func @recognizer_kernel(%arg0: memref<8x1xf32, #tpu.memory_space<vmem>>, %arg1: memref<1x128xf32, #tpu.memory_space<vmem>>, %arg2: memref<32x128xf32, #tpu.memory_space<vmem>>, %arg3: memref<1x128xf32, #tpu.memory_space<vmem>>, %arg4: memref<1x32xf32, #tpu.memory_space<vmem>>, %arg5: memref<1x1xf32, #tpu.memory_space<vmem>>, %arg6: memref<8x1xf32, #tpu.memory_space<vmem>>, %arg7: memref<8x128xf32, #tpu.memory_space<vmem>>, %arg8: memref<8x32xf32, #tpu.memory_space<vmem>>) attributes {dimension_semantics = [], scalar_prefetch = 0 : i64, scratch_operands = 2 : i64, tpu.core_type = #tpu.core_type<tc>} {
    %c0 = arith.constant 0 : index
    %c0_0 = arith.constant 0 : index
    %0 = vector.load %arg0[%c0, %c0_0] : memref<8x1xf32, #tpu.memory_space<vmem>>, vector<8x1xf32>
    %c0_1 = arith.constant 0 : index
    %c0_2 = arith.constant 0 : index
    %1 = vector.load %arg1[%c0_1, %c0_2] : memref<1x128xf32, #tpu.memory_space<vmem>>, vector<1x128xf32>
    %2 = vector.broadcast %0 : vector<8x1xf32> to vector<8x128xf32>
    %3 = vector.broadcast %1 : vector<1x128xf32> to vector<8x128xf32>
    %4 = arith.mulf %2, %3 : vector<8x128xf32>
    %c0_3 = arith.constant 0 : index
    %c0_4 = arith.constant 0 : index
    %5 = vector.load %arg3[%c0_3, %c0_4] : memref<1x128xf32, #tpu.memory_space<vmem>>, vector<1x128xf32>
    %6 = vector.broadcast %5 : vector<1x128xf32> to vector<8x128xf32>
    %7 = arith.addf %4, %6 : vector<8x128xf32>
    %c0_5 = arith.constant 0 : index
    %c0_6 = arith.constant 0 : index
    %8 = vector.load %arg7[%c0_5, %c0_6] : memref<8x128xf32, #tpu.memory_space<vmem>>, vector<8x128xf32>
    tpu.vector_store %arg7[%c0_5, %c0_6], %7 {strides = array<i32>} : memref<8x128xf32, #tpu.memory_space<vmem>>, vector<8x128xf32>,
    %9 = tpu.iota {dimensions = array<i32: 1>} : vector<1x128xi32>
    %c64_i32 = arith.constant 64 : i32
    %10 = vector.broadcast %c64_i32 : i32 to vector<1x128xi32>
    %11 = arith.cmpi sge, %9, %10 : vector<1x128xi32>
    %c96_i32 = arith.constant 96 : i32
    %12 = vector.broadcast %c96_i32 : i32 to vector<1x128xi32>
    %13 = arith.cmpi slt, %9, %12 : vector<1x128xi32>
    %14 = arith.andi %11, %13 : vector<1x128xi1>
    %cst = arith.constant 1.000000e+00 : f32
    %cst_7 = arith.constant 5.000000e-01 : f32
    %15 = vector.broadcast %cst : f32 to vector<1x128xf32>
    %16 = vector.broadcast %cst_7 : f32 to vector<1x128xf32>
    %17 = arith.select %14, %15, %16 : vector<1x128xi1>, vector<1x128xf32>
    %cst_8 = arith.constant 0.000000e+00 : f32
    %cst_9 = arith.constant 5.000000e-01 : f32
    %18 = vector.broadcast %cst_8 : f32 to vector<1x128xf32>
    %19 = vector.broadcast %cst_9 : f32 to vector<1x128xf32>
    %20 = arith.select %14, %18, %19 : vector<1x128xi1>, vector<1x128xf32>
    %cst_10 = arith.constant 0.000000e+00 : f32
    %21 = vector.broadcast %cst_10 : f32 to vector<1x32xf32>
    %cst_11 = arith.constant 0.000000e+00 : f32
    %22 = vector.broadcast %cst_11 : f32 to vector<1x32xf32>
    %c0_12 = arith.constant 0 : index
    %c0_13 = arith.constant 0 : index
    %23 = vector.load %arg7[%c0_12, %c0_13] : memref<8x128xf32, #tpu.memory_space<vmem>>, vector<1x128xf32>
    %c0_14 = arith.constant 0 : index
    %c0_15 = arith.constant 0 : index
    %24 = vector.load %arg2[%c0_14, %c0_15] : memref<32x128xf32, #tpu.memory_space<vmem>>, vector<32x128xf32>
    %cst_16 = arith.constant dense<0.000000e+00> : vector<1x128xf32>
    %25 = tpu.matmul %21, %24, %cst_16 {dimension_numbers = #tpu.dot_dimension_numbers<[1], [0], [0], [1], [0, 0, 1, 1], [], []>} : vector<1x32xf32>, vector<32x128xf32>, vector<1x128xf32> -> vector<1x128xf32>
    %26 = arith.addf %23, %25 : vector<1x128xf32>
    %27 = arith.mulf %26, %17 : vector<1x128xf32>
    %28 = math.tanh %27 : vector<1x128xf32>
    %29 = arith.mulf %28, %17 : vector<1x128xf32>
    %30 = arith.addf %29, %20 : vector<1x128xf32>
    %31 = vector.extract_strided_slice %30 {offsets = [0, 0], sizes = [1, 32], strides = [1, 1]} : vector<1x128xf32> to vector<1x32xf32>
    %32 = vector.extract_strided_slice %30 {offsets = [0, 32], sizes = [1, 32], strides = [1, 1]} : vector<1x128xf32> to vector<1x32xf32>
    %33 = vector.extract_strided_slice %30 {offsets = [0, 64], sizes = [1, 32], strides = [1, 1]} : vector<1x128xf32> to vector<1x32xf32>
    %34 = vector.extract_strided_slice %30 {offsets = [0, 96], sizes = [1, 32], strides = [1, 1]} : vector<1x128xf32> to vector<1x32xf32>
    %35 = arith.mulf %32, %22 : vector<1x32xf32>
    %36 = arith.mulf %31, %33 : vector<1x32xf32>
    %37 = arith.addf %35, %36 : vector<1x32xf32>
    %38 = math.tanh %37 : vector<1x32xf32>
    %39 = arith.mulf %34, %38 : vector<1x32xf32>
    %c0_17 = arith.constant 0 : index
    %c0_18 = arith.constant 0 : index
    %40 = vector.load %arg8[%c0_17, %c0_18] : memref<8x32xf32, #tpu.memory_space<vmem>>, vector<1x32xf32>
    tpu.vector_store %arg8[%c0_17, %c0_18], %39 {strides = array<i32>} : memref<8x32xf32, #tpu.memory_space<vmem>>, vector<1x32xf32>,
    %c1 = arith.constant 1 : index
    %c0_19 = arith.constant 0 : index
    %41 = vector.load %arg7[%c1, %c0_19] : memref<8x128xf32, #tpu.memory_space<vmem>>, vector<1x128xf32>
    %c0_20 = arith.constant 0 : index
    %c0_21 = arith.constant 0 : index
    %42 = vector.load %arg2[%c0_20, %c0_21] : memref<32x128xf32, #tpu.memory_space<vmem>>, vector<32x128xf32>
    %cst_22 = arith.constant dense<0.000000e+00> : vector<1x128xf32>
    %43 = tpu.matmul %39, %42, %cst_22 {dimension_numbers = #tpu.dot_dimension_numbers<[1], [0], [0], [1], [0, 0, 1, 1], [], []>} : vector<1x32xf32>, vector<32x128xf32>, vector<1x128xf32> -> vector<1x128xf32>
    %44 = arith.addf %41, %43 : vector<1x128xf32>
    %45 = arith.mulf %44, %17 : vector<1x128xf32>
    %46 = math.tanh %45 : vector<1x128xf32>
    %47 = arith.mulf %46, %17 : vector<1x128xf32>
    %48 = arith.addf %47, %20 : vector<1x128xf32>
    %49 = vector.extract_strided_slice %48 {offsets = [0, 0], sizes = [1, 32], strides = [1, 1]} : vector<1x128xf32> to vector<1x32xf32>
    %50 = vector.extract_strided_slice %48 {offsets = [0, 32], sizes = [1, 32], strides = [1, 1]} : vector<1x128xf32> to vector<1x32xf32>
    %51 = vector.extract_strided_slice %48 {offsets = [0, 64], sizes = [1, 32], strides = [1, 1]} : vector<1x128xf32> to vector<1x32xf32>
    %52 = vector.extract_strided_slice %48 {offsets = [0, 96], sizes = [1, 32], strides = [1, 1]} : vector<1x128xf32> to vector<1x32xf32>
    %53 = arith.mulf %50, %37 : vector<1x32xf32>
    %54 = arith.mulf %49, %51 : vector<1x32xf32>
    %55 = arith.addf %53, %54 : vector<1x32xf32>
    %56 = math.tanh %55 : vector<1x32xf32>
    %57 = arith.mulf %52, %56 : vector<1x32xf32>
    %c1_23 = arith.constant 1 : index
    %c0_24 = arith.constant 0 : index
    %58 = vector.load %arg8[%c1_23, %c0_24] : memref<8x32xf32, #tpu.memory_space<vmem>>, vector<1x32xf32>
    tpu.vector_store %arg8[%c1_23, %c0_24], %57 {strides = array<i32>} : memref<8x32xf32, #tpu.memory_space<vmem>>, vector<1x32xf32>,
    %c2 = arith.constant 2 : index
    %c0_25 = arith.constant 0 : index
    %59 = vector.load %arg7[%c2, %c0_25] : memref<8x128xf32, #tpu.memory_space<vmem>>, vector<1x128xf32>
    %c0_26 = arith.constant 0 : index
    %c0_27 = arith.constant 0 : index
    %60 = vector.load %arg2[%c0_26, %c0_27] : memref<32x128xf32, #tpu.memory_space<vmem>>, vector<32x128xf32>
    %cst_28 = arith.constant dense<0.000000e+00> : vector<1x128xf32>
    %61 = tpu.matmul %57, %60, %cst_28 {dimension_numbers = #tpu.dot_dimension_numbers<[1], [0], [0], [1], [0, 0, 1, 1], [], []>} : vector<1x32xf32>, vector<32x128xf32>, vector<1x128xf32> -> vector<1x128xf32>
    %62 = arith.addf %59, %61 : vector<1x128xf32>
    %63 = arith.mulf %62, %17 : vector<1x128xf32>
    %64 = math.tanh %63 : vector<1x128xf32>
    %65 = arith.mulf %64, %17 : vector<1x128xf32>
    %66 = arith.addf %65, %20 : vector<1x128xf32>
    %67 = vector.extract_strided_slice %66 {offsets = [0, 0], sizes = [1, 32], strides = [1, 1]} : vector<1x128xf32> to vector<1x32xf32>
    %68 = vector.extract_strided_slice %66 {offsets = [0, 32], sizes = [1, 32], strides = [1, 1]} : vector<1x128xf32> to vector<1x32xf32>
    %69 = vector.extract_strided_slice %66 {offsets = [0, 64], sizes = [1, 32], strides = [1, 1]} : vector<1x128xf32> to vector<1x32xf32>
    %70 = vector.extract_strided_slice %66 {offsets = [0, 96], sizes = [1, 32], strides = [1, 1]} : vector<1x128xf32> to vector<1x32xf32>
    %71 = arith.mulf %68, %55 : vector<1x32xf32>
    %72 = arith.mulf %67, %69 : vector<1x32xf32>
    %73 = arith.addf %71, %72 : vector<1x32xf32>
    %74 = math.tanh %73 : vector<1x32xf32>
    %75 = arith.mulf %70, %74 : vector<1x32xf32>
    %c2_29 = arith.constant 2 : index
    %c0_30 = arith.constant 0 : index
    %76 = vector.load %arg8[%c2_29, %c0_30] : memref<8x32xf32, #tpu.memory_space<vmem>>, vector<1x32xf32>
    tpu.vector_store %arg8[%c2_29, %c0_30], %75 {strides = array<i32>} : memref<8x32xf32, #tpu.memory_space<vmem>>, vector<1x32xf32>,
    %c3 = arith.constant 3 : index
    %c0_31 = arith.constant 0 : index
    %77 = vector.load %arg7[%c3, %c0_31] : memref<8x128xf32, #tpu.memory_space<vmem>>, vector<1x128xf32>
    %c0_32 = arith.constant 0 : index
    %c0_33 = arith.constant 0 : index
    %78 = vector.load %arg2[%c0_32, %c0_33] : memref<32x128xf32, #tpu.memory_space<vmem>>, vector<32x128xf32>
    %cst_34 = arith.constant dense<0.000000e+00> : vector<1x128xf32>
    %79 = tpu.matmul %75, %78, %cst_34 {dimension_numbers = #tpu.dot_dimension_numbers<[1], [0], [0], [1], [0, 0, 1, 1], [], []>} : vector<1x32xf32>, vector<32x128xf32>, vector<1x128xf32> -> vector<1x128xf32>
    %80 = arith.addf %77, %79 : vector<1x128xf32>
    %81 = arith.mulf %80, %17 : vector<1x128xf32>
    %82 = math.tanh %81 : vector<1x128xf32>
    %83 = arith.mulf %82, %17 : vector<1x128xf32>
    %84 = arith.addf %83, %20 : vector<1x128xf32>
    %85 = vector.extract_strided_slice %84 {offsets = [0, 0], sizes = [1, 32], strides = [1, 1]} : vector<1x128xf32> to vector<1x32xf32>
    %86 = vector.extract_strided_slice %84 {offsets = [0, 32], sizes = [1, 32], strides = [1, 1]} : vector<1x128xf32> to vector<1x32xf32>
    %87 = vector.extract_strided_slice %84 {offsets = [0, 64], sizes = [1, 32], strides = [1, 1]} : vector<1x128xf32> to vector<1x32xf32>
    %88 = vector.extract_strided_slice %84 {offsets = [0, 96], sizes = [1, 32], strides = [1, 1]} : vector<1x128xf32> to vector<1x32xf32>
    %89 = arith.mulf %86, %73 : vector<1x32xf32>
    %90 = arith.mulf %85, %87 : vector<1x32xf32>
    %91 = arith.addf %89, %90 : vector<1x32xf32>
    %92 = math.tanh %91 : vector<1x32xf32>
    %93 = arith.mulf %88, %92 : vector<1x32xf32>
    %c3_35 = arith.constant 3 : index
    %c0_36 = arith.constant 0 : index
    %94 = vector.load %arg8[%c3_35, %c0_36] : memref<8x32xf32, #tpu.memory_space<vmem>>, vector<1x32xf32>
    tpu.vector_store %arg8[%c3_35, %c0_36], %93 {strides = array<i32>} : memref<8x32xf32, #tpu.memory_space<vmem>>, vector<1x32xf32>,
    %c4 = arith.constant 4 : index
    %c0_37 = arith.constant 0 : index
    %95 = vector.load %arg7[%c4, %c0_37] : memref<8x128xf32, #tpu.memory_space<vmem>>, vector<1x128xf32>
    %c0_38 = arith.constant 0 : index
    %c0_39 = arith.constant 0 : index
    %96 = vector.load %arg2[%c0_38, %c0_39] : memref<32x128xf32, #tpu.memory_space<vmem>>, vector<32x128xf32>
    %cst_40 = arith.constant dense<0.000000e+00> : vector<1x128xf32>
    %97 = tpu.matmul %93, %96, %cst_40 {dimension_numbers = #tpu.dot_dimension_numbers<[1], [0], [0], [1], [0, 0, 1, 1], [], []>} : vector<1x32xf32>, vector<32x128xf32>, vector<1x128xf32> -> vector<1x128xf32>
    %98 = arith.addf %95, %97 : vector<1x128xf32>
    %99 = arith.mulf %98, %17 : vector<1x128xf32>
    %100 = math.tanh %99 : vector<1x128xf32>
    %101 = arith.mulf %100, %17 : vector<1x128xf32>
    %102 = arith.addf %101, %20 : vector<1x128xf32>
    %103 = vector.extract_strided_slice %102 {offsets = [0, 0], sizes = [1, 32], strides = [1, 1]} : vector<1x128xf32> to vector<1x32xf32>
    %104 = vector.extract_strided_slice %102 {offsets = [0, 32], sizes = [1, 32], strides = [1, 1]} : vector<1x128xf32> to vector<1x32xf32>
    %105 = vector.extract_strided_slice %102 {offsets = [0, 64], sizes = [1, 32], strides = [1, 1]} : vector<1x128xf32> to vector<1x32xf32>
    %106 = vector.extract_strided_slice %102 {offsets = [0, 96], sizes = [1, 32], strides = [1, 1]} : vector<1x128xf32> to vector<1x32xf32>
    %107 = arith.mulf %104, %91 : vector<1x32xf32>
    %108 = arith.mulf %103, %105 : vector<1x32xf32>
    %109 = arith.addf %107, %108 : vector<1x32xf32>
    %110 = math.tanh %109 : vector<1x32xf32>
    %111 = arith.mulf %106, %110 : vector<1x32xf32>
    %c4_41 = arith.constant 4 : index
    %c0_42 = arith.constant 0 : index
    %112 = vector.load %arg8[%c4_41, %c0_42] : memref<8x32xf32, #tpu.memory_space<vmem>>, vector<1x32xf32>
    tpu.vector_store %arg8[%c4_41, %c0_42], %111 {strides = array<i32>} : memref<8x32xf32, #tpu.memory_space<vmem>>, vector<1x32xf32>,
    %c5 = arith.constant 5 : index
    %c0_43 = arith.constant 0 : index
    %113 = vector.load %arg7[%c5, %c0_43] : memref<8x128xf32, #tpu.memory_space<vmem>>, vector<1x128xf32>
    %c0_44 = arith.constant 0 : index
    %c0_45 = arith.constant 0 : index
    %114 = vector.load %arg2[%c0_44, %c0_45] : memref<32x128xf32, #tpu.memory_space<vmem>>, vector<32x128xf32>
    %cst_46 = arith.constant dense<0.000000e+00> : vector<1x128xf32>
    %115 = tpu.matmul %111, %114, %cst_46 {dimension_numbers = #tpu.dot_dimension_numbers<[1], [0], [0], [1], [0, 0, 1, 1], [], []>} : vector<1x32xf32>, vector<32x128xf32>, vector<1x128xf32> -> vector<1x128xf32>
    %116 = arith.addf %113, %115 : vector<1x128xf32>
    %117 = arith.mulf %116, %17 : vector<1x128xf32>
    %118 = math.tanh %117 : vector<1x128xf32>
    %119 = arith.mulf %118, %17 : vector<1x128xf32>
    %120 = arith.addf %119, %20 : vector<1x128xf32>
    %121 = vector.extract_strided_slice %120 {offsets = [0, 0], sizes = [1, 32], strides = [1, 1]} : vector<1x128xf32> to vector<1x32xf32>
    %122 = vector.extract_strided_slice %120 {offsets = [0, 32], sizes = [1, 32], strides = [1, 1]} : vector<1x128xf32> to vector<1x32xf32>
    %123 = vector.extract_strided_slice %120 {offsets = [0, 64], sizes = [1, 32], strides = [1, 1]} : vector<1x128xf32> to vector<1x32xf32>
    %124 = vector.extract_strided_slice %120 {offsets = [0, 96], sizes = [1, 32], strides = [1, 1]} : vector<1x128xf32> to vector<1x32xf32>
    %125 = arith.mulf %122, %109 : vector<1x32xf32>
    %126 = arith.mulf %121, %123 : vector<1x32xf32>
    %127 = arith.addf %125, %126 : vector<1x32xf32>
    %128 = math.tanh %127 : vector<1x32xf32>
    %129 = arith.mulf %124, %128 : vector<1x32xf32>
    %c5_47 = arith.constant 5 : index
    %c0_48 = arith.constant 0 : index
    %130 = vector.load %arg8[%c5_47, %c0_48] : memref<8x32xf32, #tpu.memory_space<vmem>>, vector<1x32xf32>
    tpu.vector_store %arg8[%c5_47, %c0_48], %129 {strides = array<i32>} : memref<8x32xf32, #tpu.memory_space<vmem>>, vector<1x32xf32>,
    %c6 = arith.constant 6 : index
    %c0_49 = arith.constant 0 : index
    %131 = vector.load %arg7[%c6, %c0_49] : memref<8x128xf32, #tpu.memory_space<vmem>>, vector<1x128xf32>
    %c0_50 = arith.constant 0 : index
    %c0_51 = arith.constant 0 : index
    %132 = vector.load %arg2[%c0_50, %c0_51] : memref<32x128xf32, #tpu.memory_space<vmem>>, vector<32x128xf32>
    %cst_52 = arith.constant dense<0.000000e+00> : vector<1x128xf32>
    %133 = tpu.matmul %129, %132, %cst_52 {dimension_numbers = #tpu.dot_dimension_numbers<[1], [0], [0], [1], [0, 0, 1, 1], [], []>} : vector<1x32xf32>, vector<32x128xf32>, vector<1x128xf32> -> vector<1x128xf32>
    %134 = arith.addf %131, %133 : vector<1x128xf32>
    %135 = arith.mulf %134, %17 : vector<1x128xf32>
    %136 = math.tanh %135 : vector<1x128xf32>
    %137 = arith.mulf %136, %17 : vector<1x128xf32>
    %138 = arith.addf %137, %20 : vector<1x128xf32>
    %139 = vector.extract_strided_slice %138 {offsets = [0, 0], sizes = [1, 32], strides = [1, 1]} : vector<1x128xf32> to vector<1x32xf32>
    %140 = vector.extract_strided_slice %138 {offsets = [0, 32], sizes = [1, 32], strides = [1, 1]} : vector<1x128xf32> to vector<1x32xf32>
    %141 = vector.extract_strided_slice %138 {offsets = [0, 64], sizes = [1, 32], strides = [1, 1]} : vector<1x128xf32> to vector<1x32xf32>
    %142 = vector.extract_strided_slice %138 {offsets = [0, 96], sizes = [1, 32], strides = [1, 1]} : vector<1x128xf32> to vector<1x32xf32>
    %143 = arith.mulf %140, %127 : vector<1x32xf32>
    %144 = arith.mulf %139, %141 : vector<1x32xf32>
    %145 = arith.addf %143, %144 : vector<1x32xf32>
    %146 = math.tanh %145 : vector<1x32xf32>
    %147 = arith.mulf %142, %146 : vector<1x32xf32>
    %c6_53 = arith.constant 6 : index
    %c0_54 = arith.constant 0 : index
    %148 = vector.load %arg8[%c6_53, %c0_54] : memref<8x32xf32, #tpu.memory_space<vmem>>, vector<1x32xf32>
    tpu.vector_store %arg8[%c6_53, %c0_54], %147 {strides = array<i32>} : memref<8x32xf32, #tpu.memory_space<vmem>>, vector<1x32xf32>,
    %c7 = arith.constant 7 : index
    %c0_55 = arith.constant 0 : index
    %149 = vector.load %arg7[%c7, %c0_55] : memref<8x128xf32, #tpu.memory_space<vmem>>, vector<1x128xf32>
    %c0_56 = arith.constant 0 : index
    %c0_57 = arith.constant 0 : index
    %150 = vector.load %arg2[%c0_56, %c0_57] : memref<32x128xf32, #tpu.memory_space<vmem>>, vector<32x128xf32>
    %cst_58 = arith.constant dense<0.000000e+00> : vector<1x128xf32>
    %151 = tpu.matmul %147, %150, %cst_58 {dimension_numbers = #tpu.dot_dimension_numbers<[1], [0], [0], [1], [0, 0, 1, 1], [], []>} : vector<1x32xf32>, vector<32x128xf32>, vector<1x128xf32> -> vector<1x128xf32>
    %152 = arith.addf %149, %151 : vector<1x128xf32>
    %153 = arith.mulf %152, %17 : vector<1x128xf32>
    %154 = math.tanh %153 : vector<1x128xf32>
    %155 = arith.mulf %154, %17 : vector<1x128xf32>
    %156 = arith.addf %155, %20 : vector<1x128xf32>
    %157 = vector.extract_strided_slice %156 {offsets = [0, 0], sizes = [1, 32], strides = [1, 1]} : vector<1x128xf32> to vector<1x32xf32>
    %158 = vector.extract_strided_slice %156 {offsets = [0, 32], sizes = [1, 32], strides = [1, 1]} : vector<1x128xf32> to vector<1x32xf32>
    %159 = vector.extract_strided_slice %156 {offsets = [0, 64], sizes = [1, 32], strides = [1, 1]} : vector<1x128xf32> to vector<1x32xf32>
    %160 = vector.extract_strided_slice %156 {offsets = [0, 96], sizes = [1, 32], strides = [1, 1]} : vector<1x128xf32> to vector<1x32xf32>
    %161 = arith.mulf %158, %145 : vector<1x32xf32>
    %162 = arith.mulf %157, %159 : vector<1x32xf32>
    %163 = arith.addf %161, %162 : vector<1x32xf32>
    %164 = math.tanh %163 : vector<1x32xf32>
    %165 = arith.mulf %160, %164 : vector<1x32xf32>
    %c7_59 = arith.constant 7 : index
    %c0_60 = arith.constant 0 : index
    %166 = vector.load %arg8[%c7_59, %c0_60] : memref<8x32xf32, #tpu.memory_space<vmem>>, vector<1x32xf32>
    tpu.vector_store %arg8[%c7_59, %c0_60], %165 {strides = array<i32>} : memref<8x32xf32, #tpu.memory_space<vmem>>, vector<1x32xf32>,
    %c0_61 = arith.constant 0 : index
    %c0_62 = arith.constant 0 : index
    %167 = vector.load %arg8[%c0_61, %c0_62] : memref<8x32xf32, #tpu.memory_space<vmem>>, vector<8x32xf32>
    %c0_63 = arith.constant 0 : index
    %c0_64 = arith.constant 0 : index
    %168 = vector.load %arg4[%c0_63, %c0_64] : memref<1x32xf32, #tpu.memory_space<vmem>>, vector<1x32xf32>
    %169 = vector.broadcast %168 : vector<1x32xf32> to vector<8x32xf32>
    %170 = arith.mulf %167, %169 : vector<8x32xf32>
    %cst_65 = arith.constant dense<0.000000e+00> : vector<8xf32>
    %171 = vector.multi_reduction <add>, %170, %cst_65 [1] : vector<8x32xf32> to vector<8xf32>
    %172 = vector.shape_cast %171 : vector<8xf32> to vector<8x1xf32>
    %c0_66 = arith.constant 0 : index
    %c0_67 = arith.constant 0 : index
    %173 = vector.load %arg5[%c0_66, %c0_67] : memref<1x1xf32, #tpu.memory_space<vmem>>, vector<1x1xf32>
    %174 = vector.broadcast %173 : vector<1x1xf32> to vector<8x1xf32>
    %175 = arith.addf %172, %174 : vector<8x1xf32>
    %176 = arith.negf %175 : vector<8x1xf32>
    %177 = math.exp %176 : vector<8x1xf32>
    %cst_68 = arith.constant 1.000000e+00 : f32
    %178 = vector.broadcast %cst_68 : f32 to vector<8x1xf32>
    %179 = arith.addf %178, %177 : vector<8x1xf32>
    %180 = arith.divf %178, %179 : vector<8x1xf32>
    %c0_69 = arith.constant 0 : index
    %c0_70 = arith.constant 0 : index
    %181 = vector.load %arg6[%c0_69, %c0_70] : memref<8x1xf32, #tpu.memory_space<vmem>>, vector<8x1xf32>
    tpu.vector_store %arg6[%c0_69, %c0_70], %180 {strides = array<i32>} : memref<8x1xf32, #tpu.memory_space<vmem>>, vector<8x1xf32>,
    return
  }
}

</mosaic_0001>

<llo_original>
// kernel: tpu_custom_call.1
$region0: #{tpu_custom_call.1}
  #allocation0 [shape = 'u32[]', space=smem, size = 0x4, offset = 0x4, fixed_abs, tag = 'smem constant byte address 0x4 - core index']
  #allocation1 [shape = 'u32[144,128]{1,0:T(1,128)}', space=vmem, size = 0x12000, scoped, tag = 'internal scratch']
  #allocation2 [shape = 'f32[8,128]{1,0:T(8,128)}', space=vmem, size = 0x1000, scoped, tag = 'scratch operand']
  #allocation3 [shape = 'f32[8,32]{1,0:T(8,128)}', space=vmem, size = 0x1000, scoped, tag = 'scratch operand']
  #allocation4 [shape = 'f32[1,1]{1,0:T(1,128)S(1)}', space=vmem, size = 0x200, scoped, tag = 'scoped memory for tpu_custom_call.1']
  %s0 = inlined_call_operand.vmem [shape: f32[8,1], index: 0, kind: input, shape index: {}]
  %s1 = inlined_call_operand.vmem [shape: f32[1,128], index: 1, kind: input, shape index: {}]
  %s2 = inlined_call_operand.hbm [shape: f32[32,128], index: 2, kind: input, shape index: {}]
  %s3 = inlined_call_operand.vmem [shape: f32[1,128], index: 3, kind: input, shape index: {}]
  %s4 = inlined_call_operand.vmem [shape: f32[1,32], index: 4, kind: input, shape index: {}]
  %s5 = inlined_call_operand.<no memory space> [shape: f32[1,1], index: 5, kind: input, shape index: {}]
  %s6 = inlined_call_operand.vmem [shape: f32[8,1], index: 6, kind: output, shape index: {}]
  %s7 = sld [smem:[#allocation0]]
  $region38: #{tpu_custom_call.1} parent=0
    _
  %s9 = ssub.s32 1, %s7
  %s10 = scalar_select 0, %s9, %s7
  %v11 = vstv %s5
  %12 = vst [vmem:[#allocation4] sm:$0x1] %v11
  $region1: #{tpu_custom_call.1} parent=0
    #allocation5 [shape = 'u8[16384]{0}', space=vmem, size = 0x4000, scoped, tag = 'input window, operand 2, single buffered']
    #allocation6 [shape = 's32[1]{0}', space=sflag, size = 0x4, scoped, tag = 'scoped memory for tpu_custom_call.1']
    %13 = vsyncpa [#allocation6], 0
    // Predicated region
    $region2: #{tpu_custom_call.1} parent=1 // pred_check
      _
    $region3: #{tpu_custom_call.1} parent=1 // pred_check_branch
      %15 = sbr.rel (0) target = $region5
    $region4: #{tpu_custom_call.1} parent=1 // pred_region
      _
    $region5: #{tpu_custom_call.1} parent=1 // pred_fallthru
      _
    // Predicated region
    $region6: #{tpu_custom_call.1} parent=1 // pred_check
      _
    $region7: #{tpu_custom_call.1} parent=1 // pred_check_branch
      %17 = sbr.rel (0) target = $region9
    $region8: #{tpu_custom_call.1} parent=1 // pred_region
      _
    $region9: #{tpu_custom_call.1} parent=1 // pred_fallthru
      _
    // Predicated region
    $region10: #{tpu_custom_call.1} parent=1 // pred_check
      _
    $region11: #{tpu_custom_call.1} parent=1 // pred_check_branch
      %19 = sbr.rel (0) target = $region13
    $region12: #{tpu_custom_call.1} parent=1 // pred_region
      %s21 = ssub.s32 512, 512
      %22 = vsyncadd [#allocation6], %s21
      %s23 = sshll.u32 [#allocation5], 4
      %s24 = int_to_ptr.vmem [resolvable:$true] %s23
      %29 = dma.hbm_to_vmem [thread:$0]  %s2, 512, %s24, [#allocation6], 128, 128, 8
    $region13: #{tpu_custom_call.1} parent=1 // pred_fallthru
      _
    // Predicated region
    $region14: #{tpu_custom_call.1} parent=1 // pred_check
      _
    $region15: #{tpu_custom_call.1} parent=1 // pred_check_branch
      %31 = sbr.rel (0) target = $region17
    $region16: #{tpu_custom_call.1} parent=1 // pred_region
      _
    $region17: #{tpu_custom_call.1} parent=1 // pred_fallthru
      _
    // Predicated region
    $region18: #{tpu_custom_call.1} parent=1 // pred_check
      _
    $region19: #{tpu_custom_call.1} parent=1 // pred_check_branch
      %33 = sbr.rel (0) target = $region21
    $region20: #{tpu_custom_call.1} parent=1 // pred_region
      _
    $region21: #{tpu_custom_call.1} parent=1 // pred_fallthru
      _
    // Predicated region
    $region22: #{tpu_custom_call.1} parent=1 // pred_check
      _
    $region23: #{tpu_custom_call.1} parent=1 // pred_check_branch
      %35 = sbr.rel (0) target = $region25
    $region24: #{tpu_custom_call.1} parent=1 // pred_region
      _
    $region25: #{tpu_custom_call.1} parent=1 // pred_fallthru
      _
    // Predicated region
    $region26: #{tpu_custom_call.1} parent=1 // pred_check
      _
    $region27: #{tpu_custom_call.1} parent=1 // pred_check_branch
      %37 = sbr.rel (0) target = $region29
    $region28: #{tpu_custom_call.1} parent=1 // pred_region
      %38 = dma.done [#allocation6], 512
    $region29: #{tpu_custom_call.1} parent=1 // pred_fallthru
      _
    %v39 = vld [vmem:[%s0] sm:$0xff]
    %v40 = vld [vmem:[%s1] sm:$0x1]
    %42 = vset.pattern.permute.xlu0 0
    %43 = vperm.xlu0 %42, %v39
    %v44 = vpop.permute.xlu0 %43
    %v47 = vlaneseq
    %v48 = vshrl.u32 %v47, 7
    %v49 = vsub.s32 0, %v48
    %v50 = vrot.slane %v40, %v49
    %v52 = vmul.f32 %v44, %v50
    %v53 = vld [vmem:[%s3] sm:$0x1]
    %v55 = vlaneseq
    %v56 = vshrl.u32 %v55, 7
    %v57 = vsub.s32 0, %v56
    %v58 = vrot.slane %v53, %v57
    %v60 = vadd.f32 %v52, %v58
    %61 = vst [vmem:[#allocation2] sm:$0xff] %v60
    %v62 = vlaneseq
    %v63 = vand.u32 %v62, 127
    %vm64 = vcmp.ge.s32.totalorder %v63, 64
    %vm65 = vcmp.lt.s32.totalorder %v63, 96
    %vm66 = vmand %vm64, %vm65
    %v67 = vsel %vm66, 1.0, 0.5
    %v68 = vsel %vm66, 0.0, 0.5
    %v69 = vld [vmem:[#allocation2] sm:$0x1]
    %v70 = vld [vmem:[#allocation5] sm:$0xff]
    %v71 = vld [vmem:[#allocation5 + $0x8] sm:$0xff]
    %v72 = vld [vmem:[#allocation5 + $0x10] sm:$0xff]
    %v73 = vld [vmem:[#allocation5 + $0x18] sm:$0xff]
    %vm74 = vcmask 261120
    %v76 = vsel %vm74, 0.0, 0
    %78 = vmatprep.subr.mxu0 0.0
    %79 = vmatpush1.msra.mxu0 %v70
    %80 = vmatprep.subr.mxu0 0.0
    %81 = vmatpush1.msra.mxu0 %v71
    %82 = vmatprep.subr.mxu0 0.0
    %83 = vmatpush1.msra.mxu0 %v72
    %84 = vmatprep.subr.mxu0 0.0
    %85 = vmatpush1.msra.mxu0 %v73
    %86 = vmatprep.subr.mxu0 0.0
    %87 = vmatpush1.msra.mxu0 0.0
    %88 = vmatprep.subr.mxu0 0.0
    %89 = vmatpush1.msra.mxu0 0.0
    %90 = vmatprep.subr.mxu0 0.0
    %91 = vmatpush1.msra.mxu0 0.0
    %92 = vmatprep.subr.mxu0 0.0
    %93 = vmatpush1.msra.mxu0 0.0
    %94 = vmatprep.subr.mxu0 0.0
    %95 = vmatpush1.msra.mxu0 0.0
    %96 = vmatprep.subr.mxu0 0.0
    %97 = vmatpush1.msra.mxu0 0.0
    %98 = vmatprep.subr.mxu0 0.0
    %99 = vmatpush1.msra.mxu0 0.0
    %100 = vmatprep.subr.mxu0 0.0
    %101 = vmatpush1.msra.mxu0 0.0
    %102 = vmatprep.subr.mxu0 0.0
    %103 = vmatpush1.msra.mxu0 0.0
    %104 = vmatprep.subr.mxu0 0.0
    %105 = vmatpush1.msra.mxu0 0.0
    %106 = vmatprep.subr.mxu0 0.0
    %107 = vmatpush1.msra.mxu0 0.0
    %108 = vmatprep.subr.mxu0 0.0
    %109 = vmatpush1.msra.mxu0 0.0
    %110 = vmatprep.subr.mxu0 0.0
    %111 = vmatpush1.msra.mxu0 0.0
    %112 = vmatprep.subr.mxu0 0.0
    %113 = vmatpush1.msra.mxu0 0.0
    %114 = vmatprep.subr.mxu0 0.0
    %115 = vmatpush1.msra.mxu0 0.0
    %116 = vmatprep.subr.mxu0 0.0
    %117 = vmatpush1.msra.mxu0 0.0
    %118 = vmatprep.subr.mxu0 0.0
    %119 = vmatpush1.msra.mxu0 0.0
    %120 = vmatprep.subr.mxu0 0.0
    %121 = vmatpush1.msra.mxu0 0.0
    %122 = vmatprep.subr.mxu0 0.0
    %123 = vmatpush1.msra.mxu0 0.0
    %124 = vmatprep.subr.mxu0 0.0
    %125 = vmatpush1.msra.mxu0 0.0
    %126 = vmatprep.subr.mxu0 0.0
    %127 = vmatpush1.msra.mxu0 0.0
    %128 = vmatprep.subr.mxu0 0.0
    %129 = vmatpush1.msra.mxu0 0.0
    %130 = vmatprep.subr.mxu0 0.0
    %131 = vmatpush1.msra.mxu0 0.0
    %132 = vmatprep.subr.mxu0 0.0
    %133 = vmatpush1.msra.mxu0 0.0
    %134 = vmatprep.subr.mxu0 0.0
    %135 = vmatpush1.msra.mxu0 0.0
    %136 = vmatprep.subr.mxu0 0.0
    %137 = vmatpush1.msra.mxu0 0.0
    %138 = vmatprep.subr.mxu0 0.0
    %139 = vmatpush1.msra.mxu0 0.0
    %140 = vmatprep.subr.mxu0 0.0
    %141 = vmatpush1.msra.mxu0 0.0
    %142 = vmatprep.mubr.f32.mxu0 0.0
    %143 = vmatmul.mubr.f32.gmra.mrb[0].mxu0 %v76
    %v144 = vpop.f32.mrb[0].mxu0
    %v145 = vadd.f32 0.0, %v144
    %v146 = vpop.f32.mrb[0].mxu0
    %147 = vdwg.mxu0
    %v148 = vadd.f32 %v69, %v145
    %v149 = vmul.f32 %v148, %v67
    %v150 = vtanh.pop %v149
    %v151 = vmul.f32 %v150, %v67
    %v152 = vadd.f32 %v151, %v68
    %v153 = vmul.f32 %v152, 0.0
    %155 = vrot.lane.b32.xlu0 %v152, 64
    %v156 = vpop.permute.xlu0 %155
    %v158 = vmul.f32 %v152, %v156
    %160 = vrot.lane.b32.xlu0 %v158, 32
    %v161 = vpop.permute.xlu0 %160
    %v163 = vadd.f32 %v153, %v161
    %v164 = vtanh.pop %v163
    %166 = vrot.lane.b32.xlu0 %v164, 64
    %v167 = vpop.permute.xlu0 %166
    %v169 = vmul.f32 %v152, %v167
    %171 = vrot.lane.b32.xlu0 %v169, 32
    %v172 = vpop.permute.xlu0 %171
    %vm174 = vcmask 253952
    %175 = vst.msk [vmem:[#allocation3] sm:$0x1] %vm174, %v172
    %v176 = vld [vmem:[#allocation2 + $0x1] sm:$0x1]
    %v177 = vld [vmem:[#allocation5] sm:$0xff]
    %v178 = vld [vmem:[#allocation5 + $0x8] sm:$0xff]
    %v179 = vld [vmem:[#allocation5 + $0x10] sm:$0xff]
    %v180 = vld [vmem:[#allocation5 + $0x18] sm:$0xff]
    %v181 = vsel %vm74, %v172, 0
    %183 = vmatprep.subr.mxu0 0.0
    %184 = vmatpush1.msra.mxu0 %v177
    %185 = vmatprep.subr.mxu0 0.0
    %186 = vmatpush1.msra.mxu0 %v178
    %187 = vmatprep.subr.mxu0 0.0
    %188 = vmatpush1.msra.mxu0 %v179
    %189 = vmatprep.subr.mxu0 0.0
    %190 = vmatpush1.msra.mxu0 %v180
    %191 = vmatprep.subr.mxu0 0.0
    %192 = vmatpush1.msra.mxu0 0.0
    %193 = vmatprep.subr.mxu0 0.0
    %194 = vmatpush1.msra.mxu0 0.0
    %195 = vmatprep.subr.mxu0 0.0
    %196 = vmatpush1.msra.mxu0 0.0
    %197 = vmatprep.subr.mxu0 0.0
    %198 = vmatpush1.msra.mxu0 0.0
    %199 = vmatprep.subr.mxu0 0.0
    %200 = vmatpush1.msra.mxu0 0.0
    %201 = vmatprep.subr.mxu0 0.0
    %202 = vmatpush1.msra.mxu0 0.0
    %203 = vmatprep.subr.mxu0 0.0
    %204 = vmatpush1.msra.mxu0 0.0
    %205 = vmatprep.subr.mxu0 0.0
    %206 = vmatpush1.msra.mxu0 0.0
    %207 = vmatprep.subr.mxu0 0.0
    %208 = vmatpush1.msra.mxu0 0.0
    %209 = vmatprep.subr.mxu0 0.0
    %210 = vmatpush1.msra.mxu0 0.0
    %211 = vmatprep.subr.mxu0 0.0
    %212 = vmatpush1.msra.mxu0 0.0
    %213 = vmatprep.subr.mxu0 0.0
    %214 = vmatpush1.msra.mxu0 0.0
    %215 = vmatprep.subr.mxu0 0.0
    %216 = vmatpush1.msra.mxu0 0.0
    %217 = vmatprep.subr.mxu0 0.0
    %218 = vmatpush1.msra.mxu0 0.0
    %219 = vmatprep.subr.mxu0 0.0
    %220 = vmatpush1.msra.mxu0 0.0
    %221 = vmatprep.subr.mxu0 0.0
    %222 = vmatpush1.msra.mxu0 0.0
    %223 = vmatprep.subr.mxu0 0.0
    %224 = vmatpush1.msra.mxu0 0.0
    %225 = vmatprep.subr.mxu0 0.0
    %226 = vmatpush1.msra.mxu0 0.0
    %227 = vmatprep.subr.mxu0 0.0
    %228 = vmatpush1.msra.mxu0 0.0
    %229 = vmatprep.subr.mxu0 0.0
    %230 = vmatpush1.msra.mxu0 0.0
    %231 = vmatprep.subr.mxu0 0.0
    %232 = vmatpush1.msra.mxu0 0.0
    %233 = vmatprep.subr.mxu0 0.0
    %234 = vmatpush1.msra.mxu0 0.0
    %235 = vmatprep.subr.mxu0 0.0
    %236 = vmatpush1.msra.mxu0 0.0
    %237 = vmatprep.subr.mxu0 0.0
    %238 = vmatpush1.msra.mxu0 0.0
    %239 = vmatprep.subr.mxu0 0.0
    %240 = vmatpush1.msra.mxu0 0.0
    %241 = vmatprep.subr.mxu0 0.0
    %242 = vmatpush1.msra.mxu0 0.0
    %243 = vmatprep.subr.mxu0 0.0
    %244 = vmatpush1.msra.mxu0 0.0
    %245 = vmatprep.subr.mxu0 0.0
    %246 = vmatpush1.msra.mxu0 0.0
    %247 = vmatprep.mubr.f32.mxu0 0.0
    %248 = vmatmul.mubr.f32.gmra.mrb[0].mxu0 %v181
    %v249 = vpop.f32.mrb[0].mxu0
    %v250 = vadd.f32 0.0, %v249
    %v251 = vpop.f32.mrb[0].mxu0
    %252 = vdwg.mxu0
    %v253 = vadd.f32 %v176, %v250
    %v254 = vmul.f32 %v253, %v67
    %v255 = vtanh.pop %v254
    %v256 = vmul.f32 %v255, %v67
    %v257 = vadd.f32 %v256, %v68
    %v258 = vmul.f32 %v257, %v163
    %260 = vrot.lane.b32.xlu0 %v257, 64
    %v261 = vpop.permute.xlu0 %260
    %v263 = vmul.f32 %v257, %v261
    %265 = vrot.lane.b32.xlu0 %v263, 32
    %v266 = vpop.permute.xlu0 %265
    %v268 = vadd.f32 %v258, %v266
    %v269 = vtanh.pop %v268
    %271 = vrot.lane.b32.xlu0 %v269, 64
    %v272 = vpop.permute.xlu0 %271
    %v274 = vmul.f32 %v257, %v272
    %276 = vrot.lane.b32.xlu0 %v274, 32
    %v277 = vpop.permute.xlu0 %276
    %279 = vst.msk [vmem:[#allocation3 + $0x1] sm:$0x1] %vm174, %v277
    %v280 = vld [vmem:[#allocation2 + $0x2] sm:$0x1]
    %v281 = vld [vmem:[#allocation5] sm:$0xff]
    %v282 = vld [vmem:[#allocation5 + $0x8] sm:$0xff]
    %v283 = vld [vmem:[#allocation5 + $0x10] sm:$0xff]
    %v284 = vld [vmem:[#allocation5 + $0x18] sm:$0xff]
    %v285 = vsel %vm74, %v277, 0
    %287 = vmatprep.subr.mxu0 0.0
    %288 = vmatpush1.msra.mxu0 %v281
    %289 = vmatprep.subr.mxu0 0.0
    %290 = vmatpush1.msra.mxu0 %v282
    %291 = vmatprep.subr.mxu0 0.0
    %292 = vmatpush1.msra.mxu0 %v283
    %293 = vmatprep.subr.mxu0 0.0
    %294 = vmatpush1.msra.mxu0 %v284
    %295 = vmatprep.subr.mxu0 0.0
    %296 = vmatpush1.msra.mxu0 0.0
    %297 = vmatprep.subr.mxu0 0.0
    %298 = vmatpush1.msra.mxu0 0.0
    %299 = vmatprep.subr.mxu0 0.0
    %300 = vmatpush1.msra.mxu0 0.0
    %301 = vmatprep.subr.mxu0 0.0
    %302 = vmatpush1.msra.mxu0 0.0
    %303 = vmatprep.subr.mxu0 0.0
    %304 = vmatpush1.msra.mxu0 0.0
    %305 = vmatprep.subr.mxu0 0.0
    %306 = vmatpush1.msra.mxu0 0.0
    %307 = vmatprep.subr.mxu0 0.0
    %308 = vmatpush1.msra.mxu0 0.0
    %309 = vmatprep.subr.mxu0 0.0
    %310 = vmatpush1.msra.mxu0 0.0
    %311 = vmatprep.subr.mxu0 0.0
    %312 = vmatpush1.msra.mxu0 0.0
    %313 = vmatprep.subr.mxu0 0.0
    %314 = vmatpush1.msra.mxu0 0.0
    %315 = vmatprep.subr.mxu0 0.0
    %316 = vmatpush1.msra.mxu0 0.0
    %317 = vmatprep.subr.mxu0 0.0
    %318 = vmatpush1.msra.mxu0 0.0
    %319 = vmatprep.subr.mxu0 0.0
    %320 = vmatpush1.msra.mxu0 0.0
    %321 = vmatprep.subr.mxu0 0.0
    %322 = vmatpush1.msra.mxu0 0.0
    %323 = vmatprep.subr.mxu0 0.0
    %324 = vmatpush1.msra.mxu0 0.0
    %325 = vmatprep.subr.mxu0 0.0
    %326 = vmatpush1.msra.mxu0 0.0
    %327 = vmatprep.subr.mxu0 0.0
    %328 = vmatpush1.msra.mxu0 0.0
    %329 = vmatprep.subr.mxu0 0.0
    %330 = vmatpush1.msra.mxu0 0.0
    %331 = vmatprep.subr.mxu0 0.0
    %332 = vmatpush1.msra.mxu0 0.0
    %333 = vmatprep.subr.mxu0 0.0
    %334 = vmatpush1.msra.mxu0 0.0
    %335 = vmatprep.subr.mxu0 0.0
    %336 = vmatpush1.msra.mxu0 0.0
    %337 = vmatprep.subr.mxu0 0.0
    %338 = vmatpush1.msra.mxu0 0.0
    %339 = vmatprep.subr.mxu0 0.0
    %340 = vmatpush1.msra.mxu0 0.0
    %341 = vmatprep.subr.mxu0 0.0
    %342 = vmatpush1.msra.mxu0 0.0
    %343 = vmatprep.subr.mxu0 0.0
    %344 = vmatpush1.msra.mxu0 0.0
    %345 = vmatprep.subr.mxu0 0.0
    %346 = vmatpush1.msra.mxu0 0.0
    %347 = vmatprep.subr.mxu0 0.0
    %348 = vmatpush1.msra.mxu0 0.0
    %349 = vmatprep.subr.mxu0 0.0
    %350 = vmatpush1.msra.mxu0 0.0
    %351 = vmatprep.mubr.f32.mxu0 0.0
    %352 = vmatmul.mubr.f32.gmra.mrb[0].mxu0 %v285
    %v353 = vpop.f32.mrb[0].mxu0
    %v354 = vadd.f32 0.0, %v353
    %v355 = vpop.f32.mrb[0].mxu0
    %356 = vdwg.mxu0
    %v357 = vadd.f32 %v280, %v354
    %v358 = vmul.f32 %v357, %v67
    %v359 = vtanh.pop %v358
    %v360 = vmul.f32 %v359, %v67
    %v361 = vadd.f32 %v360, %v68
    %v362 = vmul.f32 %v361, %v268
    %364 = vrot.lane.b32.xlu0 %v361, 64
    %v365 = vpop.permute.xlu0 %364
    %v367 = vmul.f32 %v361, %v365
    %369 = vrot.lane.b32.xlu0 %v367, 32
    %v370 = vpop.permute.xlu0 %369
    %v372 = vadd.f32 %v362, %v370
    %v373 = vtanh.pop %v372
    %375 = vrot.lane.b32.xlu0 %v373, 64
    %v376 = vpop.permute.xlu0 %375
    %v378 = vmul.f32 %v361, %v376
    %380 = vrot.lane.b32.xlu0 %v378, 32
    %v381 = vpop.permute.xlu0 %380
    %383 = vst.msk [vmem:[#allocation3 + $0x2] sm:$0x1] %vm174, %v381
    %v384 = vld [vmem:[#allocation2 + $0x3] sm:$0x1]
    %v385 = vld [vmem:[#allocation5] sm:$0xff]
    %v386 = vld [vmem:[#allocation5 + $0x8] sm:$0xff]
    %v387 = vld [vmem:[#allocation5 + $0x10] sm:$0xff]
    %v388 = vld [vmem:[#allocation5 + $0x18] sm:$0xff]
    %v389 = vsel %vm74, %v381, 0
    %391 = vmatprep.subr.mxu0 0.0
    %392 = vmatpush1.msra.mxu0 %v385
    %393 = vmatprep.subr.mxu0 0.0
    %394 = vmatpush1.msra.mxu0 %v386
    %395 = vmatprep.subr.mxu0 0.0
    %396 = vmatpush1.msra.mxu0 %v387
    %397 = vmatprep.subr.mxu0 0.0
    %398 = vmatpush1.msra.mxu0 %v388
    %399 = vmatprep.subr.mxu0 0.0
    %400 = vmatpush1.msra.mxu0 0.0
    %401 = vmatprep.subr.mxu0 0.0
    %402 = vmatpush1.msra.mxu0 0.0
    %403 = vmatprep.subr.mxu0 0.0
    %404 = vmatpush1.msra.mxu0 0.0
    %405 = vmatprep.subr.mxu0 0.0
    %406 = vmatpush1.msra.mxu0 0.0
    %407 = vmatprep.subr.mxu0 0.0
    %408 = vmatpush1.msra.mxu0 0.0
    %409 = vmatprep.subr.mxu0 0.0
    %410 = vmatpush1.msra.mxu0 0.0
    %411 = vmatprep.subr.mxu0 0.0
    %412 = vmatpush1.msra.mxu0 0.0
    %413 = vmatprep.subr.mxu0 0.0
    %414 = vmatpush1.msra.mxu0 0.0
    %415 = vmatprep.subr.mxu0 0.0
    %416 = vmatpush1.msra.mxu0 0.0
    %417 = vmatprep.subr.mxu0 0.0
    %418 = vmatpush1.msra.mxu0 0.0
    %419 = vmatprep.subr.mxu0 0.0
    %420 = vmatpush1.msra.mxu0 0.0
    %421 = vmatprep.subr.mxu0 0.0
    %422 = vmatpush1.msra.mxu0 0.0
    %423 = vmatprep.subr.mxu0 0.0
    %424 = vmatpush1.msra.mxu0 0.0
    %425 = vmatprep.subr.mxu0 0.0
    %426 = vmatpush1.msra.mxu0 0.0
    %427 = vmatprep.subr.mxu0 0.0
    %428 = vmatpush1.msra.mxu0 0.0
    %429 = vmatprep.subr.mxu0 0.0
    %430 = vmatpush1.msra.mxu0 0.0
    %431 = vmatprep.subr.mxu0 0.0
    %432 = vmatpush1.msra.mxu0 0.0
    %433 = vmatprep.subr.mxu0 0.0
    %434 = vmatpush1.msra.mxu0 0.0
    %435 = vmatprep.subr.mxu0 0.0
    %436 = vmatpush1.msra.mxu0 0.0
    %437 = vmatprep.subr.mxu0 0.0
    %438 = vmatpush1.msra.mxu0 0.0
    %439 = vmatprep.subr.mxu0 0.0
    %440 = vmatpush1.msra.mxu0 0.0
    %441 = vmatprep.subr.mxu0 0.0
    %442 = vmatpush1.msra.mxu0 0.0
    %443 = vmatprep.subr.mxu0 0.0
    %444 = vmatpush1.msra.mxu0 0.0
    %445 = vmatprep.subr.mxu0 0.0
    %446 = vmatpush1.msra.mxu0 0.0
    %447 = vmatprep.subr.mxu0 0.0
    %448 = vmatpush1.msra.mxu0 0.0
    %449 = vmatprep.subr.mxu0 0.0
    %450 = vmatpush1.msra.mxu0 0.0
    %451 = vmatprep.subr.mxu0 0.0
    %452 = vmatpush1.msra.mxu0 0.0
    %453 = vmatprep.subr.mxu0 0.0
    %454 = vmatpush1.msra.mxu0 0.0
    %455 = vmatprep.mubr.f32.mxu0 0.0
    %456 = vmatmul.mubr.f32.gmra.mrb[0].mxu0 %v389
    %v457 = vpop.f32.mrb[0].mxu0
    %v458 = vadd.f32 0.0, %v457
    %v459 = vpop.f32.mrb[0].mxu0
    %460 = vdwg.mxu0
    %v461 = vadd.f32 %v384, %v458
    %v462 = vmul.f32 %v461, %v67
    %v463 = vtanh.pop %v462
    %v464 = vmul.f32 %v463, %v67
    %v465 = vadd.f32 %v464, %v68
    %v466 = vmul.f32 %v465, %v372
    %468 = vrot.lane.b32.xlu0 %v465, 64
    %v469 = vpop.permute.xlu0 %468
    %v471 = vmul.f32 %v465, %v469
    %473 = vrot.lane.b32.xlu0 %v471, 32
    %v474 = vpop.permute.xlu0 %473
    %v476 = vadd.f32 %v466, %v474
    %v477 = vtanh.pop %v476
    %479 = vrot.lane.b32.xlu0 %v477, 64
    %v480 = vpop.permute.xlu0 %479
    %v482 = vmul.f32 %v465, %v480
    %484 = vrot.lane.b32.xlu0 %v482, 32
    %v485 = vpop.permute.xlu0 %484
    %487 = vst.msk [vmem:[#allocation3 + $0x3] sm:$0x1] %vm174, %v485
    %v488 = vld [vmem:[#allocation2 + $0x4] sm:$0x1]
    %v489 = vld [vmem:[#allocation5] sm:$0xff]
    %v490 = vld [vmem:[#allocation5 + $0x8] sm:$0xff]
    %v491 = vld [vmem:[#allocation5 + $0x10] sm:$0xff]
    %v492 = vld [vmem:[#allocation5 + $0x18] sm:$0xff]
    %v493 = vsel %vm74, %v485, 0
    %495 = vmatprep.subr.mxu0 0.0
    %496 = vmatpush1.msra.mxu0 %v489
    %497 = vmatprep.subr.mxu0 0.0
    %498 = vmatpush1.msra.mxu0 %v490
    %499 = vmatprep.subr.mxu0 0.0
    %500 = vmatpush1.msra.mxu0 %v491
    %501 = vmatprep.subr.mxu0 0.0
    %502 = vmatpush1.msra.mxu0 %v492
    %503 = vmatprep.subr.mxu0 0.0
    %504 = vmatpush1.msra.mxu0 0.0
    %505 = vmatprep.subr.mxu0 0.0
    %506 = vmatpush1.msra.mxu0 0.0
    %507 = vmatprep.subr.mxu0 0.0
    %508 = vmatpush1.msra.mxu0 0.0
    %509 = vmatprep.subr.mxu0 0.0
    %510 = vmatpush1.msra.mxu0 0.0
    %511 = vmatprep.subr.mxu0 0.0
    %512 = vmatpush1.msra.mxu0 0.0
    %513 = vmatprep.subr.mxu0 0.0
    %514 = vmatpush1.msra.mxu0 0.0
    %515 = vmatprep.subr.mxu0 0.0
    %516 = vmatpush1.msra.mxu0 0.0
    %517 = vmatprep.subr.mxu0 0.0
    %518 = vmatpush1.msra.mxu0 0.0
    %519 = vmatprep.subr.mxu0 0.0
    %520 = vmatpush1.msra.mxu0 0.0
    %521 = vmatprep.subr.mxu0 0.0
    %522 = vmatpush1.msra.mxu0 0.0
    %523 = vmatprep.subr.mxu0 0.0
    %524 = vmatpush1.msra.mxu0 0.0
    %525 = vmatprep.subr.mxu0 0.0
    %526 = vmatpush1.msra.mxu0 0.0
    %527 = vmatprep.subr.mxu0 0.0
    %528 = vmatpush1.msra.mxu0 0.0
    %529 = vmatprep.subr.mxu0 0.0
    %530 = vmatpush1.msra.mxu0 0.0
    %531 = vmatprep.subr.mxu0 0.0
    %532 = vmatpush1.msra.mxu0 0.0
    %533 = vmatprep.subr.mxu0 0.0
    %534 = vmatpush1.msra.mxu0 0.0
    %535 = vmatprep.subr.mxu0 0.0
    %536 = vmatpush1.msra.mxu0 0.0
    %537 = vmatprep.subr.mxu0 0.0
    %538 = vmatpush1.msra.mxu0 0.0
    %539 = vmatprep.subr.mxu0 0.0
    %540 = vmatpush1.msra.mxu0 0.0
    %541 = vmatprep.subr.mxu0 0.0
    %542 = vmatpush1.msra.mxu0 0.0
    %543 = vmatprep.subr.mxu0 0.0
    %544 = vmatpush1.msra.mxu0 0.0
    %545 = vmatprep.subr.mxu0 0.0
    %546 = vmatpush1.msra.mxu0 0.0
    %547 = vmatprep.subr.mxu0 0.0
    %548 = vmatpush1.msra.mxu0 0.0
    %549 = vmatprep.subr.mxu0 0.0
    %550 = vmatpush1.msra.mxu0 0.0
    %551 = vmatprep.subr.mxu0 0.0
    %552 = vmatpush1.msra.mxu0 0.0
    %553 = vmatprep.subr.mxu0 0.0
    %554 = vmatpush1.msra.mxu0 0.0
    %555 = vmatprep.subr.mxu0 0.0
    %556 = vmatpush1.msra.mxu0 0.0
    %557 = vmatprep.subr.mxu0 0.0
    %558 = vmatpush1.msra.mxu0 0.0
    %559 = vmatprep.mubr.f32.mxu0 0.0
    %560 = vmatmul.mubr.f32.gmra.mrb[0].mxu0 %v493
    %v561 = vpop.f32.mrb[0].mxu0
    %v562 = vadd.f32 0.0, %v561
    %v563 = vpop.f32.mrb[0].mxu0
    %564 = vdwg.mxu0
    %v565 = vadd.f32 %v488, %v562
    %v566 = vmul.f32 %v565, %v67
    %v567 = vtanh.pop %v566
    %v568 = vmul.f32 %v567, %v67
    %v569 = vadd.f32 %v568, %v68
    %v570 = vmul.f32 %v569, %v476
    %572 = vrot.lane.b32.xlu0 %v569, 64
    %v573 = vpop.permute.xlu0 %572
    %v575 = vmul.f32 %v569, %v573
    %577 = vrot.lane.b32.xlu0 %v575, 32
    %v578 = vpop.permute.xlu0 %577
    %v580 = vadd.f32 %v570, %v578
    %v581 = vtanh.pop %v580
    %583 = vrot.lane.b32.xlu0 %v581, 64
    %v584 = vpop.permute.xlu0 %583
    %v586 = vmul.f32 %v569, %v584
    %588 = vrot.lane.b32.xlu0 %v586, 32
    %v589 = vpop.permute.xlu0 %588
    %591 = vst.msk [vmem:[#allocation3 + $0x4] sm:$0x1] %vm174, %v589
    %v592 = vld [vmem:[#allocation2 + $0x5] sm:$0x1]
    %v593 = vld [vmem:[#allocation5] sm:$0xff]
    %v594 = vld [vmem:[#allocation5 + $0x8] sm:$0xff]
    %v595 = vld [vmem:[#allocation5 + $0x10] sm:$0xff]
    %v596 = vld [vmem:[#allocation5 + $0x18] sm:$0xff]
    %v597 = vsel %vm74, %v589, 0
    %599 = vmatprep.subr.mxu0 0.0
    %600 = vmatpush1.msra.mxu0 %v593
    %601 = vmatprep.subr.mxu0 0.0
    %602 = vmatpush1.msra.mxu0 %v594
    %603 = vmatprep.subr.mxu0 0.0
    %604 = vmatpush1.msra.mxu0 %v595
    %605 = vmatprep.subr.mxu0 0.0
    %606 = vmatpush1.msra.mxu0 %v596
    %607 = vmatprep.subr.mxu0 0.0
    %608 = vmatpush1.msra.mxu0 0.0
    %609 = vmatprep.subr.mxu0 0.0
    %610 = vmatpush1.msra.mxu0 0.0
    %611 = vmatprep.subr.mxu0 0.0
    %612 = vmatpush1.msra.mxu0 0.0
    %613 = vmatprep.subr.mxu0 0.0
    %614 = vmatpush1.msra.mxu0 0.0
    %615 = vmatprep.subr.mxu0 0.0
    %616 = vmatpush1.msra.mxu0 0.0
    %617 = vmatprep.subr.mxu0 0.0
    %618 = vmatpush1.msra.mxu0 0.0
    %619 = vmatprep.subr.mxu0 0.0
    %620 = vmatpush1.msra.mxu0 0.0
    %621 = vmatprep.subr.mxu0 0.0
    %622 = vmatpush1.msra.mxu0 0.0
    %623 = vmatprep.subr.mxu0 0.0
    %624 = vmatpush1.msra.mxu0 0.0
    %625 = vmatprep.subr.mxu0 0.0
    %626 = vmatpush1.msra.mxu0 0.0
    %627 = vmatprep.subr.mxu0 0.0
    %628 = vmatpush1.msra.mxu0 0.0
    %629 = vmatprep.subr.mxu0 0.0
    %630 = vmatpush1.msra.mxu0 0.0
    %631 = vmatprep.subr.mxu0 0.0
    %632 = vmatpush1.msra.mxu0 0.0
    %633 = vmatprep.subr.mxu0 0.0
    %634 = vmatpush1.msra.mxu0 0.0
    %635 = vmatprep.subr.mxu0 0.0
    %636 = vmatpush1.msra.mxu0 0.0
    %637 = vmatprep.subr.mxu0 0.0
    %638 = vmatpush1.msra.mxu0 0.0
    %639 = vmatprep.subr.mxu0 0.0
    %640 = vmatpush1.msra.mxu0 0.0
    %641 = vmatprep.subr.mxu0 0.0
    %642 = vmatpush1.msra.mxu0 0.0
    %643 = vmatprep.subr.mxu0 0.0
    %644 = vmatpush1.msra.mxu0 0.0
    %645 = vmatprep.subr.mxu0 0.0
    %646 = vmatpush1.msra.mxu0 0.0
    %647 = vmatprep.subr.mxu0 0.0
    %648 = vmatpush1.msra.mxu0 0.0
    %649 = vmatprep.subr.mxu0 0.0
    %650 = vmatpush1.msra.mxu0 0.0
    %651 = vmatprep.subr.mxu0 0.0
    %652 = vmatpush1.msra.mxu0 0.0
    %653 = vmatprep.subr.mxu0 0.0
    %654 = vmatpush1.msra.mxu0 0.0
    %655 = vmatprep.subr.mxu0 0.0
    %656 = vmatpush1.msra.mxu0 0.0
    %657 = vmatprep.subr.mxu0 0.0
    %658 = vmatpush1.msra.mxu0 0.0
    %659 = vmatprep.subr.mxu0 0.0
    %660 = vmatpush1.msra.mxu0 0.0
    %661 = vmatprep.subr.mxu0 0.0
    %662 = vmatpush1.msra.mxu0 0.0
    %663 = vmatprep.mubr.f32.mxu0 0.0
    %664 = vmatmul.mubr.f32.gmra.mrb[0].mxu0 %v597
    %v665 = vpop.f32.mrb[0].mxu0
    %v666 = vadd.f32 0.0, %v665
    %v667 = vpop.f32.mrb[0].mxu0
    %668 = vdwg.mxu0
    %v669 = vadd.f32 %v592, %v666
    %v670 = vmul.f32 %v669, %v67
    %v671 = vtanh.pop %v670
    %v672 = vmul.f32 %v671, %v67
    %v673 = vadd.f32 %v672, %v68
    %v674 = vmul.f32 %v673, %v580
    %676 = vrot.lane.b32.xlu0 %v673, 64
    %v677 = vpop.permute.xlu0 %676
    %v679 = vmul.f32 %v673, %v677
    %681 = vrot.lane.b32.xlu0 %v679, 32
    %v682 = vpop.permute.xlu0 %681
    %v684 = vadd.f32 %v674, %v682
    %v685 = vtanh.pop %v684
    %687 = vrot.lane.b32.xlu0 %v685, 64
    %v688 = vpop.permute.xlu0 %687
    %v690 = vmul.f32 %v673, %v688
    %692 = vrot.lane.b32.xlu0 %v690, 32
    %v693 = vpop.permute.xlu0 %692
    %695 = vst.msk [vmem:[#allocation3 + $0x5] sm:$0x1] %vm174, %v693
    %v696 = vld [vmem:[#allocation2 + $0x6] sm:$0x1]
    %v697 = vld [vmem:[#allocation5] sm:$0xff]
    %v698 = vld [vmem:[#allocation5 + $0x8] sm:$0xff]
    %v699 = vld [vmem:[#allocation5 + $0x10] sm:$0xff]
    %v700 = vld [vmem:[#allocation5 + $0x18] sm:$0xff]
    %v701 = vsel %vm74, %v693, 0
    %703 = vmatprep.subr.mxu0 0.0
    %704 = vmatpush1.msra.mxu0 %v697
    %705 = vmatprep.subr.mxu0 0.0
    %706 = vmatpush1.msra.mxu0 %v698
    %707 = vmatprep.subr.mxu0 0.0
    %708 = vmatpush1.msra.mxu0 %v699
    %709 = vmatprep.subr.mxu0 0.0
    %710 = vmatpush1.msra.mxu0 %v700
    %711 = vmatprep.subr.mxu0 0.0
    %712 = vmatpush1.msra.mxu0 0.0
    %713 = vmatprep.subr.mxu0 0.0
    %714 = vmatpush1.msra.mxu0 0.0
    %715 = vmatprep.subr.mxu0 0.0
    %716 = vmatpush1.msra.mxu0 0.0
    %717 = vmatprep.subr.mxu0 0.0
    %718 = vmatpush1.msra.mxu0 0.0
    %719 = vmatprep.subr.mxu0 0.0
    %720 = vmatpush1.msra.mxu0 0.0
    %721 = vmatprep.subr.mxu0 0.0
    %722 = vmatpush1.msra.mxu0 0.0
    %723 = vmatprep.subr.mxu0 0.0
    %724 = vmatpush1.msra.mxu0 0.0
    %725 = vmatprep.subr.mxu0 0.0
    %726 = vmatpush1.msra.mxu0 0.0
    %727 = vmatprep.subr.mxu0 0.0
    %728 = vmatpush1.msra.mxu0 0.0
    %729 = vmatprep.subr.mxu0 0.0
    %730 = vmatpush1.msra.mxu0 0.0
    %731 = vmatprep.subr.mxu0 0.0
    %732 = vmatpush1.msra.mxu0 0.0
    %733 = vmatprep.subr.mxu0 0.0
    %734 = vmatpush1.msra.mxu0 0.0
    %735 = vmatprep.subr.mxu0 0.0
    %736 = vmatpush1.msra.mxu0 0.0
    %737 = vmatprep.subr.mxu0 0.0
    %738 = vmatpush1.msra.mxu0 0.0
    %739 = vmatprep.subr.mxu0 0.0
    %740 = vmatpush1.msra.mxu0 0.0
    %741 = vmatprep.subr.mxu0 0.0
    %742 = vmatpush1.msra.mxu0 0.0
    %743 = vmatprep.subr.mxu0 0.0
    %744 = vmatpush1.msra.mxu0 0.0
    %745 = vmatprep.subr.mxu0 0.0
    %746 = vmatpush1.msra.mxu0 0.0
    %747 = vmatprep.subr.mxu0 0.0
    %748 = vmatpush1.msra.mxu0 0.0
    %749 = vmatprep.subr.mxu0 0.0
    %750 = vmatpush1.msra.mxu0 0.0
    %751 = vmatprep.subr.mxu0 0.0
    %752 = vmatpush1.msra.mxu0 0.0
    %753 = vmatprep.subr.mxu0 0.0
    %754 = vmatpush1.msra.mxu0 0.0
    %755 = vmatprep.subr.mxu0 0.0
    %756 = vmatpush1.msra.mxu0 0.0
    %757 = vmatprep.subr.mxu0 0.0
    %758 = vmatpush1.msra.mxu0 0.0
    %759 = vmatprep.subr.mxu0 0.0
    %760 = vmatpush1.msra.mxu0 0.0
    %761 = vmatprep.subr.mxu0 0.0
    %762 = vmatpush1.msra.mxu0 0.0
    %763 = vmatprep.subr.mxu0 0.0
    %764 = vmatpush1.msra.mxu0 0.0
    %765 = vmatprep.subr.mxu0 0.0
    %766 = vmatpush1.msra.mxu0 0.0
    %767 = vmatprep.mubr.f32.mxu0 0.0
    %768 = vmatmul.mubr.f32.gmra.mrb[0].mxu0 %v701
    %v769 = vpop.f32.mrb[0].mxu0
    %v770 = vadd.f32 0.0, %v769
    %v771 = vpop.f32.mrb[0].mxu0
    %772 = vdwg.mxu0
    %v773 = vadd.f32 %v696, %v770
    %v774 = vmul.f32 %v773, %v67
    %v775 = vtanh.pop %v774
    %v776 = vmul.f32 %v775, %v67
    %v777 = vadd.f32 %v776, %v68
    %v778 = vmul.f32 %v777, %v684
    %780 = vrot.lane.b32.xlu0 %v777, 64
    %v781 = vpop.permute.xlu0 %780
    %v783 = vmul.f32 %v777, %v781
    %785 = vrot.lane.b32.xlu0 %v783, 32
    %v786 = vpop.permute.xlu0 %785
    %v788 = vadd.f32 %v778, %v786
    %v789 = vtanh.pop %v788
    %791 = vrot.lane.b32.xlu0 %v789, 64
    %v792 = vpop.permute.xlu0 %791
    %v794 = vmul.f32 %v777, %v792
    %796 = vrot.lane.b32.xlu0 %v794, 32
    %v797 = vpop.permute.xlu0 %796
    %799 = vst.msk [vmem:[#allocation3 + $0x6] sm:$0x1] %vm174, %v797
    %v800 = vld [vmem:[#allocation2 + $0x7] sm:$0x1]
    %v801 = vld [vmem:[#allocation5] sm:$0xff]
    %v802 = vld [vmem:[#allocation5 + $0x8] sm:$0xff]
    %v803 = vld [vmem:[#allocation5 + $0x10] sm:$0xff]
    %v804 = vld [vmem:[#allocation5 + $0x18] sm:$0xff]
    %v805 = vsel %vm74, %v797, 0
    %807 = vmatprep.subr.mxu0 0.0
    %808 = vmatpush1.msra.mxu0 %v801
    %809 = vmatprep.subr.mxu0 0.0
    %810 = vmatpush1.msra.mxu0 %v802
    %811 = vmatprep.subr.mxu0 0.0
    %812 = vmatpush1.msra.mxu0 %v803
    %813 = vmatprep.subr.mxu0 0.0
    %814 = vmatpush1.msra.mxu0 %v804
    %815 = vmatprep.subr.mxu0 0.0
    %816 = vmatpush1.msra.mxu0 0.0
    %817 = vmatprep.subr.mxu0 0.0
    %818 = vmatpush1.msra.mxu0 0.0
    %819 = vmatprep.subr.mxu0 0.0
    %820 = vmatpush1.msra.mxu0 0.0
    %821 = vmatprep.subr.mxu0 0.0
    %822 = vmatpush1.msra.mxu0 0.0
    %823 = vmatprep.subr.mxu0 0.0
    %824 = vmatpush1.msra.mxu0 0.0
    %825 = vmatprep.subr.mxu0 0.0
    %826 = vmatpush1.msra.mxu0 0.0
    %827 = vmatprep.subr.mxu0 0.0
    %828 = vmatpush1.msra.mxu0 0.0
    %829 = vmatprep.subr.mxu0 0.0
    %830 = vmatpush1.msra.mxu0 0.0
    %831 = vmatprep.subr.mxu0 0.0
    %832 = vmatpush1.msra.mxu0 0.0
    %833 = vmatprep.subr.mxu0 0.0
    %834 = vmatpush1.msra.mxu0 0.0
    %835 = vmatprep.subr.mxu0 0.0
    %836 = vmatpush1.msra.mxu0 0.0
    %837 = vmatprep.subr.mxu0 0.0
    %838 = vmatpush1.msra.mxu0 0.0
    %839 = vmatprep.subr.mxu0 0.0
    %840 = vmatpush1.msra.mxu0 0.0
    %841 = vmatprep.subr.mxu0 0.0
    %842 = vmatpush1.msra.mxu0 0.0
    %843 = vmatprep.subr.mxu0 0.0
    %844 = vmatpush1.msra.mxu0 0.0
    %845 = vmatprep.subr.mxu0 0.0
    %846 = vmatpush1.msra.mxu0 0.0
    %847 = vmatprep.subr.mxu0 0.0
    %848 = vmatpush1.msra.mxu0 0.0
    %849 = vmatprep.subr.mxu0 0.0
    %850 = vmatpush1.msra.mxu0 0.0
    %851 = vmatprep.subr.mxu0 0.0
    %852 = vmatpush1.msra.mxu0 0.0
    %853 = vmatprep.subr.mxu0 0.0
    %854 = vmatpush1.msra.mxu0 0.0
    %855 = vmatprep.subr.mxu0 0.0
    %856 = vmatpush1.msra.mxu0 0.0
    %857 = vmatprep.subr.mxu0 0.0
    %858 = vmatpush1.msra.mxu0 0.0
    %859 = vmatprep.subr.mxu0 0.0
    %860 = vmatpush1.msra.mxu0 0.0
    %861 = vmatprep.subr.mxu0 0.0
    %862 = vmatpush1.msra.mxu0 0.0
    %863 = vmatprep.subr.mxu0 0.0
    %864 = vmatpush1.msra.mxu0 0.0
    %865 = vmatprep.subr.mxu0 0.0
    %866 = vmatpush1.msra.mxu0 0.0
    %867 = vmatprep.subr.mxu0 0.0
    %868 = vmatpush1.msra.mxu0 0.0
    %869 = vmatprep.subr.mxu0 0.0
    %870 = vmatpush1.msra.mxu0 0.0
    %871 = vmatprep.mubr.f32.mxu0 0.0
    %872 = vmatmul.mubr.f32.gmra.mrb[0].mxu0 %v805
    %v873 = vpop.f32.mrb[0].mxu0
    %v874 = vadd.f32 0.0, %v873
    %v875 = vpop.f32.mrb[0].mxu0
    %876 = vdwg.mxu0
    %v877 = vadd.f32 %v800, %v874
    %v878 = vmul.f32 %v877, %v67
    %v879 = vtanh.pop %v878
    %v880 = vmul.f32 %v879, %v67
    %v881 = vadd.f32 %v880, %v68
    %v882 = vmul.f32 %v881, %v788
    %884 = vrot.lane.b32.xlu0 %v881, 64
    %v885 = vpop.permute.xlu0 %884
    %v887 = vmul.f32 %v881, %v885
    %889 = vrot.lane.b32.xlu0 %v887, 32
    %v890 = vpop.permute.xlu0 %889
    %v892 = vadd.f32 %v882, %v890
    %v893 = vtanh.pop %v892
    %895 = vrot.lane.b32.xlu0 %v893, 64
    %v896 = vpop.permute.xlu0 %895
    %v898 = vmul.f32 %v881, %v896
    %900 = vrot.lane.b32.xlu0 %v898, 32
    %v901 = vpop.permute.xlu0 %900
    %903 = vst.msk [vmem:[#allocation3 + $0x7] sm:$0x1] %vm174, %v901
    %v904 = vld [vmem:[#allocation3] sm:$0xff]
    %v905 = vld [vmem:[%s4] sm:$0x1]
    %v907 = vlaneseq
    %v908 = vshrl.u32 %v907, 7
    %v909 = vsub.s32 0, %v908
    %v910 = vrot.slane %v905, %v909
    %v912 = vmul.f32 %v904, %v910
    %v913 = vsel %vm74, %v912, 0.0
    %914 = vadd.xlane.f32.xlu0 %v913
    %v915 = vpop.xlane.xlu0 %914
    %v916 = vld [vmem:[#allocation4] sm:$0x1]
    %v918 = vlaneseq
    %v919 = vshrl.u32 %v918, 7
    %v920 = vsub.s32 0, %v919
    %v921 = vrot.slane %v916, %v920
    %v923 = vadd.f32 %v915, %v921
    %v924 = vxor.u32 %v923, 2147483648
    %v925 = vmul.f32 %v924, 1.442695
    %v926 = vpow.pop %v925
    %v927 = vadd.f32 %v926, 1.0
    %v928 = vrcp.pop %v927
    %v929 = vmul.f32 1.0, %v928
    %vm930 = vcmask 7168
    %931 = vst.msk [vmem:[%s6] sm:$0xff] %vm930, %v929
    // Predicated region
    $region30: #{tpu_custom_call.1} parent=1 // pred_check
      _
    $region31: #{tpu_custom_call.1} parent=1 // pred_check_branch
      %933 = sbr.rel (0) target = $region33
    $region32: #{tpu_custom_call.1} parent=1 // pred_region
      _
    $region33: #{tpu_custom_call.1} parent=1 // pred_fallthru
      _
    // Predicated region
    $region34: #{tpu_custom_call.1} parent=1 // pred_check
      _
    $region35: #{tpu_custom_call.1} parent=1 // pred_check_branch
      %935 = sbr.rel (0) target = $region37
    $region36: #{tpu_custom_call.1} parent=1 // pred_region
      _
    $region37: #{tpu_custom_call.1} parent=1 // pred_fallthru
      _
    %936 = vsyncpa [#allocation6], 1

</llo_original>
